<compile_context>
chip_gen: v5e
topology: v5e:2x2
jax: 0.10.0
libtpu: 0.0.40
codegen_flags: <defaults>
</compile_context>

<pallas_src>
import jax
import jax.numpy as jnp
from jax.experimental import pallas as pl
from jax.experimental.pallas import tpu as pltpu


def _round_up(a, m):
    return ((a + m - 1) // m) * m


def final_layer_kernel(x_ref, shift_ref, scale_ref, w_ref, b_ref, o_ref):
    # x tile: (1, TILE_T, H) -> (TILE_T, H); stats in f32.
    x = x_ref[0].astype(jnp.float32)

    # LayerNorm over hidden dim, no affine, eps = 1e-6 (single-pass stats).
    mean = jnp.mean(x, axis=-1, keepdims=True)
    meansq = jnp.mean(x * x, axis=-1, keepdims=True)
    var = meansq - mean * mean
    xn = (x - mean) * jax.lax.rsqrt(var + 1e-6)

    # modulate(x, shift, scale) = x * (1 + scale) + shift (broadcast over tokens)
    shift = shift_ref[0].astype(jnp.float32)        # (1, H)
    scale = scale_ref[0].astype(jnp.float32)        # (1, H)
    mod = xn * (1.0 + scale) + shift                # (TILE_T, H)

    # Final linear projection -> (TILE_T, O_pad), lane-dense output store.
    out = jnp.dot(mod, w_ref[...].astype(jnp.float32),
                  preferred_element_type=jnp.float32)
    out = out + b_ref[...].astype(jnp.float32)
    o_ref[0] = out.astype(o_ref.dtype)


def final_layer(x, c, w_ada, b_ada, w_lin, b_lin, *, tile_t_max=512):
    B, T, H = x.shape
    O = w_lin.shape[1]

    # --- adaLN modulation hoisted out of the kernel (tiny GEMM, done by XLA) ---
    silu_c = c * jax.nn.sigmoid(c)
    ada = silu_c @ w_ada + b_ada                    # (B, 2H)
    shift = ada[:, :H].reshape(B, 1, H).astype(x.dtype)
    scale = ada[:, H:].reshape(B, 1, H).astype(x.dtype)

    # --- Lane-dense output: pad O up to a multiple of 128 lanes -------------
    O_pad = _round_up(O, 128)
    if O_pad != O:
        w_lin_p = jnp.zeros((H, O_pad), w_lin.dtype).at[:, :O].set(w_lin)
        b_lin_p = jnp.zeros((O_pad,), b_lin.dtype).at[:O].set(b_lin)
    else:
        w_lin_p, b_lin_p = w_lin, b_lin
    b_lin_p = b_lin_p.reshape(1, O_pad)

    # --- Token tiling: (8,128)-compatible tile; pad ragged T with zeros -----
    # TILE_T kept modest so 2x(x tile) + 2x(out tile) + weights fit comfortably
    # in VMEM on all of v5e/v6e/v7x even at H~1152.
    tile_t = min(tile_t_max, _round_up(T, 8))
    T_pad = _round_up(T, tile_t)
    if T_pad != T:
        x_in = jnp.zeros((B, T_pad, H), x.dtype).at[:, :T, :].set(x)
    else:
        x_in = x

    grid = (B, T_pad // tile_t)

    out = pl.pallas_call(
        final_layer_kernel,
        out_shape=jax.ShapeDtypeStruct((B, T_pad, O_pad), x.dtype),
        grid_spec=pltpu.PrefetchScalarGridSpec(
            num_scalar_prefetch=0,
            grid=grid,
            in_specs=[
                # x: per (batch, token-tile) block, streamed.
                pl.BlockSpec((1, tile_t, H), lambda b, t: (b, t, 0)),
                # shift / scale: per-batch, constant across token tiles.
                pl.BlockSpec((1, 1, H), lambda b, t: (b, 0, 0)),
                pl.BlockSpec((1, 1, H), lambda b, t: (b, 0, 0)),
                # Shared weights: constant index map -> single-buffered.
                pl.BlockSpec((H, O_pad), lambda b, t: (0, 0),
                             pipeline_mode=pl.Buffered(1)),
                pl.BlockSpec((1, O_pad), lambda b, t: (0, 0),
                             pipeline_mode=pl.Buffered(1)),
            ],
            out_specs=pl.BlockSpec((1, tile_t, O_pad), lambda b, t: (b, t, 0)),
        ),
        compiler_params=pltpu.CompilerParams(
            dimension_semantics=("parallel", "parallel"),
            vmem_limit_bytes=32 * 1024 * 1024,
        ),
    )(x_in, shift, scale, w_lin_p, b_lin_p)

    # Slice off token / output-feature padding.
    return out[:, :T, :O]


def final_layer_ref(x, c, w_ada, b_ada, w_lin, b_lin):
    """Pure-JAX reference mirroring the PyTorch module."""
    H = x.shape[-1]
    silu_c = c * jax.nn.sigmoid(c)
    ada = silu_c @ w_ada + b_ada
    shift, scale = ada[:, :H], ada[:, H:]
    mean = x.mean(-1, keepdims=True)
    var = ((x - mean) ** 2).mean(-1, keepdims=True)
    xn = (x - mean) / jnp.sqrt(var + 1e-6)
    mod = xn * (1.0 + scale[:, None, :]) + shift[:, None, :]
    return mod @ w_lin + b_lin


if __name__ == "__main__":
    # Small shapes consistent with the module.
    B, T, H = 2, 8, 32
    patch_size, out_channels = 2, 4
    O = patch_size * patch_size * out_channels  # 16

    key = jax.random.PRNGKey(0)
    kx, kc, k1, k2, k3, k4 = jax.random.split(key, 6)

    x = jax.random.normal(kx, (B, T, H), dtype=jnp.float32)
    c = jax.random.normal(kc, (B, H), dtype=jnp.float32)

    # Deterministic synthetic parameters (stored pre-transposed: (in, out)).
    w_ada = jax.random.normal(k1, (H, 2 * H), dtype=jnp.float32) * 0.02
    b_ada = jax.random.normal(k2, (2 * H,), dtype=jnp.float32) * 0.02
    w_lin = jax.random.normal(k3, (H, O), dtype=jnp.float32) * 0.02
    b_lin = jax.random.normal(k4, (O,), dtype=jnp.float32) * 0.02

    out = final_layer(x, c, w_ada, b_ada, w_lin, b_lin)
    out = jax.block_until_ready(out)

    ref = final_layer_ref(x, c, w_ada, b_ada, w_lin, b_lin)
    assert out.shape == (B, T, O)
    assert jnp.allclose(out, ref, atol=1e-5, rtol=1e-5), "mismatch vs reference"

    print("KERNEL_OK")
</pallas_src>

<mosaic_0001>
module attributes {stable_mosaic.version = 11 : i64} {
  func.func @final_layer_kernel(%arg0: i32, %arg1: i32, %arg2: memref<1x8x32xf32, #tpu.memory_space<vmem>>, %arg3: memref<1x1x32xf32, #tpu.memory_space<vmem>>, %arg4: memref<1x1x32xf32, #tpu.memory_space<vmem>>, %arg5: memref<32x128xf32, #tpu.memory_space<vmem>>, %arg6: memref<1x128xf32, #tpu.memory_space<vmem>>, %arg7: memref<1x8x128xf32, #tpu.memory_space<vmem>>) attributes {dimension_semantics = [#tpu.dimension_semantics<parallel>, #tpu.dimension_semantics<parallel>], iteration_bounds = array<i64: 2, 1>, scalar_prefetch = 0 : i64, scratch_operands = 0 : i64, tpu.core_type = #tpu.core_type<tc>, window_params = [{transform_indices = @transform_0, window_bounds = array<i64: 1, 8, 32>}, {transform_indices = @transform_1, window_bounds = array<i64: 1, 1, 32>}, {transform_indices = @transform_2, window_bounds = array<i64: 1, 1, 32>}, {pipeline_mode = #tpu.pipeline_mode<synchronous>, transform_indices = @transform_3, window_bounds = array<i64: 32, 128>}, {pipeline_mode = #tpu.pipeline_mode<synchronous>, transform_indices = @transform_4, window_bounds = array<i64: 1, 128>}, {transform_indices = @transform_5, window_bounds = array<i64: 1, 8, 128>}]} {
    %c0 = arith.constant 0 : index
    %c0_0 = arith.constant 0 : index
    %c0_1 = arith.constant 0 : index
    %0 = vector.load %arg2[%c0, %c0_0, %c0_1] : memref<1x8x32xf32, #tpu.memory_space<vmem>>, vector<1x8x32xf32>
    %1 = vector.shape_cast %0 : vector<1x8x32xf32> to vector<8x32xf32>
    %cst = arith.constant dense<0.000000e+00> : vector<8xf32>
    %2 = vector.multi_reduction <add>, %1, %cst [1] : vector<8x32xf32> to vector<8xf32>
    %3 = vector.shape_cast %2 : vector<8xf32> to vector<8x1xf32>
    %cst_2 = arith.constant 3.200000e+01 : f32
    %4 = vector.broadcast %cst_2 : f32 to vector<8x1xf32>
    %5 = arith.divf %3, %4 : vector<8x1xf32>
    %6 = arith.mulf %1, %1 : vector<8x32xf32>
    %cst_3 = arith.constant dense<0.000000e+00> : vector<8xf32>
    %7 = vector.multi_reduction <add>, %6, %cst_3 [1] : vector<8x32xf32> to vector<8xf32>
    %8 = vector.shape_cast %7 : vector<8xf32> to vector<8x1xf32>
    %cst_4 = arith.constant 3.200000e+01 : f32
    %9 = vector.broadcast %cst_4 : f32 to vector<8x1xf32>
    %10 = arith.divf %8, %9 : vector<8x1xf32>
    %11 = arith.mulf %5, %5 : vector<8x1xf32>
    %12 = arith.subf %10, %11 : vector<8x1xf32>
    %13 = vector.broadcast %5 : vector<8x1xf32> to vector<8x32xf32>
    %14 = arith.subf %1, %13 : vector<8x32xf32>
    %cst_5 = arith.constant 9.99999997E-7 : f32
    %15 = vector.broadcast %cst_5 : f32 to vector<8x1xf32>
    %16 = arith.addf %12, %15 : vector<8x1xf32>
    %17 = math.rsqrt %16 : vector<8x1xf32>
    %18 = vector.broadcast %17 : vector<8x1xf32> to vector<8x32xf32>
    %19 = arith.mulf %14, %18 : vector<8x32xf32>
    %c0_6 = arith.constant 0 : index
    %c0_7 = arith.constant 0 : index
    %c0_8 = arith.constant 0 : index
    %20 = vector.load %arg3[%c0_6, %c0_7, %c0_8] : memref<1x1x32xf32, #tpu.memory_space<vmem>>, vector<1x1x32xf32>
    %21 = vector.shape_cast %20 : vector<1x1x32xf32> to vector<1x32xf32>
    %c0_9 = arith.constant 0 : index
    %c0_10 = arith.constant 0 : index
    %c0_11 = arith.constant 0 : index
    %22 = vector.load %arg4[%c0_9, %c0_10, %c0_11] : memref<1x1x32xf32, #tpu.memory_space<vmem>>, vector<1x1x32xf32>
    %23 = vector.shape_cast %22 : vector<1x1x32xf32> to vector<1x32xf32>
    %cst_12 = arith.constant 1.000000e+00 : f32
    %24 = vector.broadcast %cst_12 : f32 to vector<1x32xf32>
    %25 = arith.addf %24, %23 : vector<1x32xf32>
    %26 = vector.broadcast %25 : vector<1x32xf32> to vector<8x32xf32>
    %27 = arith.mulf %19, %26 : vector<8x32xf32>
    %28 = vector.broadcast %21 : vector<1x32xf32> to vector<8x32xf32>
    %29 = arith.addf %27, %28 : vector<8x32xf32>
    %c0_13 = arith.constant 0 : index
    %c0_14 = arith.constant 0 : index
    %30 = vector.load %arg5[%c0_13, %c0_14] : memref<32x128xf32, #tpu.memory_space<vmem>>, vector<32x128xf32>
    %cst_15 = arith.constant dense<0.000000e+00> : vector<8x128xf32>
    %31 = tpu.matmul %29, %30, %cst_15 {dimension_numbers = #tpu.dot_dimension_numbers<[1], [0], [0], [1], [0, 0, 1, 1], [], []>} : vector<8x32xf32>, vector<32x128xf32>, vector<8x128xf32> -> vector<8x128xf32>
    %c0_16 = arith.constant 0 : index
    %c0_17 = arith.constant 0 : index
    %32 = vector.load %arg6[%c0_16, %c0_17] : memref<1x128xf32, #tpu.memory_space<vmem>>, vector<1x128xf32>
    %33 = vector.broadcast %32 : vector<1x128xf32> to vector<8x128xf32>
    %34 = arith.addf %31, %33 : vector<8x128xf32>
    %c0_18 = arith.constant 0 : index
    %c0_19 = arith.constant 0 : index
    %c0_20 = arith.constant 0 : index
    %35 = vector.load %arg7[%c0_18, %c0_19, %c0_20] : memref<1x8x128xf32, #tpu.memory_space<vmem>>, vector<1x8x128xf32>
    %36 = vector.shape_cast %35 : vector<1x8x128xf32> to vector<8x128xf32>
    %37 = vector.shape_cast %34 : vector<8x128xf32> to vector<1x8x128xf32>
    tpu.vector_store %arg7[%c0_18, %c0_19, %c0_20], %37 {strides = array<i32>} : memref<1x8x128xf32, #tpu.memory_space<vmem>>, vector<1x8x128xf32>,
    return
  }
  func.func @transform_0(%arg0: i32, %arg1: i32) -> (i32, i32, i32) {
    %c0_i32 = arith.constant 0 : i32
    %c0_i32_0 = arith.constant 0 : i32
    return %arg0, %arg1, %c0_i32 : i32, i32, i32
  }
  func.func @transform_1(%arg0: i32, %arg1: i32) -> (i32, i32, i32) {
    %c0_i32 = arith.constant 0 : i32
    %c0_i32_0 = arith.constant 0 : i32
    %c0_i32_1 = arith.constant 0 : i32
    return %arg0, %c0_i32, %c0_i32_0 : i32, i32, i32
  }
  func.func @transform_2(%arg0: i32, %arg1: i32) -> (i32, i32, i32) {
    %c0_i32 = arith.constant 0 : i32
    %c0_i32_0 = arith.constant 0 : i32
    %c0_i32_1 = arith.constant 0 : i32
    return %arg0, %c0_i32, %c0_i32_0 : i32, i32, i32
  }
  func.func @transform_3(%arg0: i32, %arg1: i32) -> (i32, i32) {
    %c0_i32 = arith.constant 0 : i32
    %c0_i32_0 = arith.constant 0 : i32
    %c0_i32_1 = arith.constant 0 : i32
    return %c0_i32, %c0_i32_0 : i32, i32
  }
  func.func @transform_4(%arg0: i32, %arg1: i32) -> (i32, i32) {
    %c0_i32 = arith.constant 0 : i32
    %c0_i32_0 = arith.constant 0 : i32
    %c0_i32_1 = arith.constant 0 : i32
    return %c0_i32, %c0_i32_0 : i32, i32
  }
  func.func @transform_5(%arg0: i32, %arg1: i32) -> (i32, i32, i32) {
    %c0_i32 = arith.constant 0 : i32
    %c0_i32_0 = arith.constant 0 : i32
    return %arg0, %arg1, %c0_i32 : i32, i32, i32
  }
}

</mosaic_0001>

<llo_original>
// kernel: tpu_custom_call.1
$region0: #{tpu_custom_call.1}
  #allocation0 [shape = 'u32[]', space=smem, size = 0x4, offset = 0x4, fixed_abs, tag = 'smem constant byte address 0x4 - core index']
  #allocation1 [shape = 'u32[72,128]{1,0:T(1,128)}', space=vmem, size = 0x9000, scoped, tag = 'internal scratch']
  %s0 = inlined_call_operand.hbm [shape: f32[2,8,32], index: 0, kind: input, shape index: {}]
  %s1 = inlined_call_operand.hbm [shape: f32[2,1,32], index: 1, kind: input, shape index: {}]
  %s2 = inlined_call_operand.hbm [shape: f32[2,1,32], index: 2, kind: input, shape index: {}]
  %s3 = inlined_call_operand.hbm [shape: f32[32,128], index: 3, kind: input, shape index: {}]
  %s4 = inlined_call_operand.vmem [shape: f32[1,128], index: 4, kind: input, shape index: {}]
  %s5 = inlined_call_operand.hbm [shape: f32[2,8,128], index: 5, kind: output, shape index: {}]
  %s6 = sld [smem:[#allocation0]]
  $region69: #{tpu_custom_call.1} parent=0
    _
  %s8 = ssub.s32 1, %s6
  %s9 = scalar_select 0, %s8, %s6
  $region1: #{tpu_custom_call.1} parent=0
    #allocation2 [shape = 'u8[8192]{0}', space=vmem, size = 0x2000, scoped, tag = 'input window, operand 0']
    #allocation3 [shape = 's32[2]{0}', space=sflag, size = 0x8, scoped, tag = 'scoped memory for tpu_custom_call.1']
    #allocation4 [shape = 's32[2]{0}', space=sflag, size = 0x8, scoped, tag = 'scoped memory for tpu_custom_call.1']
    #allocation5 [shape = 'u8[1024]{0}', space=vmem, size = 0x400, scoped, tag = 'input window, operand 1']
    #allocation6 [shape = 's32[2]{0}', space=sflag, size = 0x8, scoped, tag = 'scoped memory for tpu_custom_call.1']
    #allocation7 [shape = 'u8[1024]{0}', space=vmem, size = 0x400, scoped, tag = 'input window, operand 2']
    #allocation8 [shape = 'u8[16384]{0}', space=vmem, size = 0x4000, scoped, tag = 'input window, operand 3, single buffered']
    #allocation9 [shape = 's32[1]{0}', space=sflag, size = 0x4, scoped, tag = 'scoped memory for tpu_custom_call.1']
    #allocation10 [shape = 'u8[8192]{0}', space=vmem, size = 0x2000, scoped, tag = 'output window, operand 0']
    %10 = vsyncpa [#allocation3], 0
    %s11 = scalar_lea.sflag [#allocation3], 1
    %12 = vsyncpa %s11, 0
    %13 = vsyncpa [#allocation6], 0
    %s14 = scalar_lea.sflag [#allocation6], 1
    %15 = vsyncpa %s14, 0
    %16 = vsyncpa [#allocation9], 0
    %17 = vsyncpa [#allocation4], 0
    %s18 = scalar_lea.sflag [#allocation4], 1
    %19 = vsyncpa %s18, 0
    loop: start=0, step=1, limit=4
    $region2: #{tpu_custom_call.1} parent=1 // loop_pre_header
      _
    $region3: #{tpu_custom_call.1} parent=1 // loop_header
      %s21 = sphi 0, %s25
      %p22 = scmp.ge.s32.totalorder %s21, 4
      %s28 = sphi 0, %s40
      %s29 = sphi 0, %s36
      %s30 = sphi 0, %s28
      %s31 = sphi 0, %s29
      %s32 = sphi 0, %s30
      %s33 = sphi 0, %s31
      %s45 = sphi 0, %s47
      %s48 = sphi 0, %s45
      %s49 = sphi 0, %s48
      %s65 = sphi 0, %s49
      %s71 = sphi 0, %s73
      %s74 = sphi 0, %s71
      %s75 = sphi 0, %s74
      %s91 = sphi 0, %s75
      %s97 = sphi 0, %s99
      %s100 = sphi 0, %s97
      %s101 = sphi 0, %s100
      %s117 = sphi 0, %s101
      %s121 = sphi 0, %s121
      %s123 = sphi 0, %s121
      %s124 = sphi 0, %s123
      %s138 = sphi 0, %s124
      %s142 = sphi 0, %s142
      %s144 = sphi 0, %s142
      %s145 = sphi 0, %s144
      %s159 = sphi 0, %s145
      %s167 = sphi 0, %s169
      %s170 = sphi 0, %s167
      %s171 = sphi 0, %s170
      %s187 = sphi 0, %s171
    $region4: #{tpu_custom_call.1} parent=1 // loop_header_branch
      %24 = sbr.rel (%p22) target = $region8
    $region5: #{tpu_custom_call.1} parent=1 // loop_body
      %s26 = ssub.s32 %s21, 1
      %s27 = ssub.s32 %s21, 2
      %s34 = sadd.s32 1, %s29
      %p35 = scmp.ge.s32.totalorder %s34, 1
      %s36 = scalar_select %p35, 0, %s34
      %s37 = sadd.s32 1, %s28
      %s38 = scalar_select %p35, %s37, %s28
      %p39 = scmp.ge.s32.totalorder %s38, 2
      %s40 = scalar_select %p39, 0, %s38
      %s41 = ssub.s32 %s28, %s40
      %s42 = ssub.s32 %s29, %s36
      %s43 = sor.u32 %s41, %s42
      %p44 = scmp.eq.s32.totalorder %s43, 0
      %s46 = sadd.s32 %s45, 1
      %s47 = scalar_select %p44, %s45, %s46
      %p50 = pneg %p44
      %p51 = scmp.eq.s32.totalorder %s21, 1
      %p52 = por %p50, %p51
      %p53 = scmp.ne.s32.totalorder %s45, %s48
      %p54 = scmp.eq.s32.totalorder %s21, 0
      %p55 = por %p53, %p54
      %p56 = scmp.ne.s32.totalorder %s45, %s48
      %p57 = scmp.eq.s32.totalorder %s26, 1
      %p58 = por %p56, %p57
      %p59 = scmp.ne.s32.totalorder %s48, %s49
      %p60 = scmp.eq.s32.totalorder %s26, 0
      %p61 = por %p59, %p60
      %p62 = scmp.ne.s32.totalorder %s48, %s49
      %p63 = scmp.eq.s32.totalorder %s27, 1
      %p64 = por %p62, %p63
      %p66 = scmp.ne.s32.totalorder %s49, %s65
      %p67 = scmp.eq.s32.totalorder %s27, 0
      %p68 = por %p66, %p67
      %s69 = ssub.s32 %s28, %s40
      %p70 = scmp.eq.s32.totalorder %s69, 0
      %s72 = sadd.s32 %s71, 1
      %s73 = scalar_select %p70, %s71, %s72
      %p76 = pneg %p70
      %p77 = scmp.eq.s32.totalorder %s21, 1
      %p78 = por %p76, %p77
      %p79 = scmp.ne.s32.totalorder %s71, %s74
      %p80 = scmp.eq.s32.totalorder %s21, 0
      %p81 = por %p79, %p80
      %p82 = scmp.ne.s32.totalorder %s71, %s74
      %p83 = scmp.eq.s32.totalorder %s26, 1
      %p84 = por %p82, %p83
      %p85 = scmp.ne.s32.totalorder %s74, %s75
      %p86 = scmp.eq.s32.totalorder %s26, 0
      %p87 = por %p85, %p86
      %p88 = scmp.ne.s32.totalorder %s74, %s75
      %p89 = scmp.eq.s32.totalorder %s27, 1
      %p90 = por %p88, %p89
      %p92 = scmp.ne.s32.totalorder %s75, %s91
      %p93 = scmp.eq.s32.totalorder %s27, 0
      %p94 = por %p92, %p93
      %s95 = ssub.s32 %s28, %s40
      %p96 = scmp.eq.s32.totalorder %s95, 0
      %s98 = sadd.s32 %s97, 1
      %s99 = scalar_select %p96, %s97, %s98
      %p102 = pneg %p96
      %p103 = scmp.eq.s32.totalorder %s21, 1
      %p104 = por %p102, %p103
      %p105 = scmp.ne.s32.totalorder %s97, %s100
      %p106 = scmp.eq.s32.totalorder %s21, 0
      %p107 = por %p105, %p106
      %p108 = scmp.ne.s32.totalorder %s97, %s100
      %p109 = scmp.eq.s32.totalorder %s26, 1
      %p110 = por %p108, %p109
      %p111 = scmp.ne.s32.totalorder %s100, %s101
      %p112 = scmp.eq.s32.totalorder %s26, 0
      %p113 = por %p111, %p112
      %p114 = scmp.ne.s32.totalorder %s100, %s101
      %p115 = scmp.eq.s32.totalorder %s27, 1
      %p116 = por %p114, %p115
      %p118 = scmp.ne.s32.totalorder %s101, %s117
      %p119 = scmp.eq.s32.totalorder %s27, 0
      %p120 = por %p118, %p119
      %s122 = sadd.s32 %s121, 1
      %p125 = scmp.eq.s32.totalorder %s21, 1
      %p126 = scmp.ne.s32.totalorder %s121, %s123
      %p127 = scmp.eq.s32.totalorder %s21, 0
      %p128 = por %p126, %p127
      %p129 = scmp.ne.s32.totalorder %s121, %s123
      %p130 = scmp.eq.s32.totalorder %s26, 1
      %p131 = por %p129, %p130
      %p132 = scmp.ne.s32.totalorder %s123, %s124
      %p133 = scmp.eq.s32.totalorder %s26, 0
      %p134 = por %p132, %p133
      %p135 = scmp.ne.s32.totalorder %s123, %s124
      %p136 = scmp.eq.s32.totalorder %s27, 1
      %p137 = por %p135, %p136
      %p139 = scmp.ne.s32.totalorder %s124, %s138
      %p140 = scmp.eq.s32.totalorder %s27, 0
      %p141 = por %p139, %p140
      %s143 = sadd.s32 %s142, 1
      %p146 = scmp.eq.s32.totalorder %s21, 1
      %p147 = scmp.ne.s32.totalorder %s142, %s144
      %p148 = scmp.eq.s32.totalorder %s21, 0
      %p149 = por %p147, %p148
      %p150 = scmp.ne.s32.totalorder %s142, %s144
      %p151 = scmp.eq.s32.totalorder %s26, 1
      %p152 = por %p150, %p151
      %p153 = scmp.ne.s32.totalorder %s144, %s145
      %p154 = scmp.eq.s32.totalorder %s26, 0
      %p155 = por %p153, %p154
      %p156 = scmp.ne.s32.totalorder %s144, %s145
      %p157 = scmp.eq.s32.totalorder %s27, 1
      %p158 = por %p156, %p157
      %p160 = scmp.ne.s32.totalorder %s145, %s159
      %p161 = scmp.eq.s32.totalorder %s27, 0
      %p162 = por %p160, %p161
      %s163 = ssub.s32 %s28, %s40
      %s164 = ssub.s32 %s29, %s36
      %s165 = sor.u32 %s163, %s164
      %p166 = scmp.eq.s32.totalorder %s165, 0
      %s168 = sadd.s32 %s167, 1
      %s169 = scalar_select %p166, %s167, %s168
      %p172 = pneg %p166
      %p173 = scmp.eq.s32.totalorder %s21, 1
      %p174 = por %p172, %p173
      %p175 = scmp.ne.s32.totalorder %s167, %s170
      %p176 = scmp.eq.s32.totalorder %s21, 0
      %p177 = por %p175, %p176
      %p178 = scmp.ne.s32.totalorder %s167, %s170
      %p179 = scmp.eq.s32.totalorder %s26, 1
      %p180 = por %p178, %p179
      %p181 = scmp.ne.s32.totalorder %s170, %s171
      %p182 = scmp.eq.s32.totalorder %s26, 0
      %p183 = por %p181, %p182
      %p184 = scmp.ne.s32.totalorder %s170, %s171
      %p185 = scmp.eq.s32.totalorder %s27, 1
      %p186 = por %p184, %p185
      %p188 = scmp.ne.s32.totalorder %s171, %s187
      %p189 = scmp.eq.s32.totalorder %s27, 0
      %p190 = por %p188, %p189
      %p191 = scmp.le.s32.totalorder 1, %s21
      %p192 = scmp.lt.s32.totalorder %s21, 3
      %p193 = pnand %p191, %p192
      %p194 = pneg %p193
      // Predicated region
      $region9: #{tpu_custom_call.1} parent=5 // pred_check
        _
      $region10: #{tpu_custom_call.1} parent=5 // pred_check_branch
        %196 = sbr.rel (%p193) target = $region12
      $region11: #{tpu_custom_call.1} parent=5 // pred_region
        %s197 = ssub.s32 %s21, 1
        // Predicated region
        $region13: #{tpu_custom_call.1} parent=11 // pred_check
          %p198 = pneg %p134
        $region14: #{tpu_custom_call.1} parent=11 // pred_check_branch
          %200 = sbr.rel (%p198) target = $region16
        $region15: #{tpu_custom_call.1} parent=11 // pred_region
          %202 = vsyncadd [#allocation9], 0
          %s203 = sshll.u32 %s3, 4
          %s204 = int_to_ptr.hbm [resolvable:$true] %s203
          %s205 = sshll.u32 [#allocation8], 4
          %s206 = int_to_ptr.vmem [resolvable:$true] %s205
          %211 = dma.hbm_to_vmem [thread:$0]  %s204, 512, %s206, [#allocation9], 128, 128, 8
        $region16: #{tpu_custom_call.1} parent=11 // pred_fallthru
          _
        // Predicated region
        $region17: #{tpu_custom_call.1} parent=11 // pred_check
          %p212 = pneg %p155
        $region18: #{tpu_custom_call.1} parent=11 // pred_check_branch
          %214 = sbr.rel (%p212) target = $region20
        $region19: #{tpu_custom_call.1} parent=11 // pred_region
          _
        $region20: #{tpu_custom_call.1} parent=11 // pred_fallthru
          _
      $region12: #{tpu_custom_call.1} parent=5 // pred_fallthru
        _
      %p215 = scmp.lt.s32.totalorder %s21, 2
      // Predicated region
      $region21: #{tpu_custom_call.1} parent=5 // pred_check
        %p216 = pneg %p215
      $region22: #{tpu_custom_call.1} parent=5 // pred_check_branch
        %218 = sbr.rel (%p216) target = $region24
      $region23: #{tpu_custom_call.1} parent=5 // pred_region
        // Predicated region
        $region25: #{tpu_custom_call.1} parent=23 // pred_check
          %p219 = pneg %p55
        $region26: #{tpu_custom_call.1} parent=23 // pred_check_branch
          %221 = sbr.rel (%p219) target = $region28
        $region27: #{tpu_custom_call.1} parent=23 // pred_region
          %s222 = sand.u32 %s45, 1
          %s223 = scalar_lea.sflag [#allocation3], %s222
          %s224 = sand.u32 %s45, 1
          %s225 = smul.addr %s224, 8
          %s226 = scalar_lea.vmem [#allocation2], %s225
          %228 = vsyncadd %s223, 0
          %s229 = sadd.s32 %s29, %s28
          %s230 = smul.addr %s229, 8
          %s231 = scalar_lea.hbm %s0, %s230
          %s233 = sshll.u32 %s231, 4
          %s234 = int_to_ptr.hbm [resolvable:$true] %s233
          %s235 = sshll.u32 %s226, 4
          %s236 = int_to_ptr.vmem [resolvable:$true] %s235
          %238 = dma.hbm_to_vmem [thread:$0]  %s234, 128, %s236, %s223
        $region28: #{tpu_custom_call.1} parent=23 // pred_fallthru
          _
        // Predicated region
        $region29: #{tpu_custom_call.1} parent=23 // pred_check
          %p239 = pneg %p81
        $region30: #{tpu_custom_call.1} parent=23 // pred_check_branch
          %241 = sbr.rel (%p239) target = $region32
        $region31: #{tpu_custom_call.1} parent=23 // pred_region
          %s242 = sand.u32 %s21, 1
          %s243 = scalar_lea.sflag [#allocation6], %s242
          %s244 = sand.u32 %s71, 1
          %s245 = scalar_lea.vmem [#allocation5], %s244
          %247 = vsyncadd %s243, 0
          %s248 = scalar_lea.hbm %s1, %s28
          %s250 = sshll.u32 %s248, 4
          %s251 = int_to_ptr.hbm [resolvable:$true] %s250
          %s252 = sshll.u32 %s245, 4
          %s253 = int_to_ptr.vmem [resolvable:$true] %s252
          %255 = dma.hbm_to_vmem [thread:$0]  %s251, 16, %s253, %s243
        $region32: #{tpu_custom_call.1} parent=23 // pred_fallthru
          _
        // Predicated region
        $region33: #{tpu_custom_call.1} parent=23 // pred_check
          %p256 = pneg %p107
        $region34: #{tpu_custom_call.1} parent=23 // pred_check_branch
          %258 = sbr.rel (%p256) target = $region36
        $region35: #{tpu_custom_call.1} parent=23 // pred_region
          %s259 = sand.u32 %s21, 1
          %s260 = scalar_lea.sflag [#allocation6], %s259
          %s261 = sand.u32 %s97, 1
          %s262 = scalar_lea.vmem [#allocation7], %s261
          %264 = vsyncadd %s260, 0
          %s265 = scalar_lea.hbm %s2, %s28
          %s267 = sshll.u32 %s265, 4
          %s268 = int_to_ptr.hbm [resolvable:$true] %s267
          %s269 = sshll.u32 %s262, 4
          %s270 = int_to_ptr.vmem [resolvable:$true] %s269
          %272 = dma.hbm_to_vmem [thread:$0]  %s268, 16, %s270, %s260
        $region36: #{tpu_custom_call.1} parent=23 // pred_fallthru
          _
      $region24: #{tpu_custom_call.1} parent=5 // pred_fallthru
        _
      %p273 = scmp.le.s32.totalorder 1, %s21
      %p274 = scmp.lt.s32.totalorder %s21, 3
      %p275 = pnand %p273, %p274
      %p276 = pneg %p275
      // Predicated region
      $region37: #{tpu_custom_call.1} parent=5 // pred_check
        _
      $region38: #{tpu_custom_call.1} parent=5 // pred_check_branch
        %278 = sbr.rel (%p275) target = $region40
      $region39: #{tpu_custom_call.1} parent=5 // pred_region
        %s279 = ssub.s32 %s21, 1
        %s280 = sand.u32 %s48, 1
        %s281 = scalar_lea.sflag [#allocation3], %s280
        %s282 = sand.u32 %s48, 1
        %s283 = smul.addr %s282, 8
        %s284 = scalar_lea.vmem [#allocation2], %s283
        // Predicated region
        $region41: #{tpu_custom_call.1} parent=39 // pred_check
          %p285 = pneg %p61
        $region42: #{tpu_custom_call.1} parent=39 // pred_check_branch
          %287 = sbr.rel (%p285) target = $region44
        $region43: #{tpu_custom_call.1} parent=39 // pred_region
          %289 = dma.done %s281, 128
        $region44: #{tpu_custom_call.1} parent=39 // pred_fallthru
          _
        %s290 = sand.u32 %s26, 1
        %s291 = scalar_lea.sflag [#allocation6], %s290
        %s292 = sand.u32 %s74, 1
        %s293 = scalar_lea.vmem [#allocation5], %s292
        // Predicated region
        $region45: #{tpu_custom_call.1} parent=39 // pred_check
          %p294 = pneg %p87
        $region46: #{tpu_custom_call.1} parent=39 // pred_check_branch
          %296 = sbr.rel (%p294) target = $region48
        $region47: #{tpu_custom_call.1} parent=39 // pred_region
          %298 = dma.done %s291, 16
        $region48: #{tpu_custom_call.1} parent=39 // pred_fallthru
          _
        %s299 = sand.u32 %s26, 1
        %s300 = scalar_lea.sflag [#allocation6], %s299
        %s301 = sand.u32 %s100, 1
        %s302 = scalar_lea.vmem [#allocation7], %s301
        // Predicated region
        $region49: #{tpu_custom_call.1} parent=39 // pred_check
          %p303 = pneg %p113
        $region50: #{tpu_custom_call.1} parent=39 // pred_check_branch
          %305 = sbr.rel (%p303) target = $region52
        $region51: #{tpu_custom_call.1} parent=39 // pred_region
          %307 = dma.done %s300, 16
        $region52: #{tpu_custom_call.1} parent=39 // pred_fallthru
          _
        // Predicated region
        $region53: #{tpu_custom_call.1} parent=39 // pred_check
          %p308 = pneg %p134
        $region54: #{tpu_custom_call.1} parent=39 // pred_check_branch
          %310 = sbr.rel (%p308) target = $region56
        $region55: #{tpu_custom_call.1} parent=39 // pred_region
          %312 = dma.done [#allocation9], 512
        $region56: #{tpu_custom_call.1} parent=39 // pred_fallthru
          _
        %s313 = sand.u32 %s48, 1
        %s314 = scalar_lea.sflag [#allocation3], %s313
        %s315 = sand.u32 %s48, 1
        %s316 = smul.addr %s315, 8
        %s317 = scalar_lea.vmem [#allocation2], %s316
        %p318 = pneg %p61
        %p319 = pneg %p58
        %s320 = sand.u32 %s26, 1
        %s321 = scalar_lea.sflag [#allocation6], %s320
        %s322 = sand.u32 %s74, 1
        %s323 = scalar_lea.vmem [#allocation5], %s322
        %p324 = pneg %p87
        %p325 = pneg %p84
        %s326 = sand.u32 %s26, 1
        %s327 = scalar_lea.sflag [#allocation6], %s326
        %s328 = sand.u32 %s100, 1
        %s329 = scalar_lea.vmem [#allocation7], %s328
        %p330 = pneg %p113
        %p331 = pneg %p110
        %p332 = pneg %p134
        %p333 = pneg %p131
        %p334 = pneg %p155
        %p335 = pneg %p152
        %p336 = pneg %p183
        %p337 = pneg %p180
        %s338 = sand.u32 %s170, 1
        %s339 = scalar_lea.sflag [#allocation4], %s338
        %s340 = sand.u32 %s170, 1
        %s341 = smul.addr %s340, 8
        %s342 = scalar_lea.vmem [#allocation10], %s341
        %v343 = vld [vmem:[%s284] sm:$0xff]
        %vm344 = vcmask 261120
        %v345 = vsel %vm344, %v343, 0.0
        %346 = vadd.xlane.f32.xlu0 %v345
        %v347 = vpop.xlane.xlu0 %346
        %v348 = vrcp.pop 32.0
        %v349 = vmul.f32 32.0, %v348
        %v350 = vsub.f32 1.0, %v349
        %v351 = vmul.f32 %v348, %v350
        %v352 = vadd.f32 %v348, %v351
        %vm353 = vweird.f32 %v348
        %v354 = vsel %vm353, %v348, %v352
        %v355 = vmul.f32 %v347, %v354
        %v356 = vmul.f32 %v343, %v343
        %v357 = vsel %vm344, %v356, 0.0
        %358 = vadd.xlane.f32.xlu0 %v357
        %v359 = vpop.xlane.xlu0 %358
        %v360 = vmul.f32 %v359, %v354
        %v361 = vmul.f32 %v355, %v355
        %v362 = vsub.f32 %v360, %v361
        %v363 = vsub.f32 %v343, %v355
        %v364 = vadd.f32 %v362, 1e-06
        %v365 = vrsqrt.pop %v364
        %v366 = vmul.f32 %v365, %v364
        %v367 = vmul.f32 %v366, %v365
        %v368 = vmul.f32 0.5, %v367
        %v369 = vsub.f32 1.5, %v368
        %v370 = vmul.f32 %v365, %v369
        %vm371 = vweird.f32 %v364
        %vm372 = vweird.f32 %v365
        %vm373 = vmor %vm371, %vm372
        %v374 = vsel %vm373, %v365, %v370
        %v375 = vmul.f32 %v363, %v374
        %v376 = vld [vmem:[%s293] sm:$0x1]
        %v377 = vld [vmem:[%s302] sm:$0x1]
        %v378 = vadd.f32 %v377, 1.0
        %v380 = vperm.slane %v378, 0
        %v382 = vmul.f32 %v375, %v380
        %v384 = vperm.slane %v376, 0
        %v386 = vadd.f32 %v382, %v384
        %v387 = vld [vmem:[#allocation8] sm:$0xff]
        %v388 = vld [vmem:[#allocation8 + $0x8] sm:$0xff]
        %v389 = vld [vmem:[#allocation8 + $0x10] sm:$0xff]
        %v390 = vld [vmem:[#allocation8 + $0x18] sm:$0xff]
        %v391 = vld [vmem:[%s4] sm:$0x1]
        %v393 = vperm.slane %v391, 0
        %v396 = vsel %vm344, %v386, 0
        %398 = vmatpush.msra.mxu0 0.0
        %399 = vmatpush.msra.mxu0 0.0
        %400 = vmatpush.msra.mxu0 0.0
        %401 = vmatpush.msra.mxu0 0.0
        %402 = vmatpush.msra.mxu0 0.0
        %403 = vmatpush.msra.mxu0 0.0
        %404 = vmatpush.msra.mxu0 0.0
        %405 = vmatpush.msra.mxu0 0.0
        %406 = vmatpush.msra.mxu0 0.0
        %407 = vmatpush.msra.mxu0 0.0
        %408 = vmatpush.msra.mxu0 0.0
        %409 = vmatpush.msra.mxu0 0.0
        %410 = vmatpush.msra.mxu0 %v390
        %411 = vmatpush.msra.mxu0 %v389
        %412 = vmatpush.msra.mxu0 %v388
        %413 = vmatpush.msra.mxu0 %v387
        %414 = vmatmul.f32.gmra.mxu0 %v396
        %v415 = vpop.f32.mrf.mxu0
        %v416 = vadd.f32 %v393, %v415
        %417 = vdwg.mxu0
        %418 = vst [vmem:[%s342] sm:$0xff] %v416
        %s419 = sand.u32 %s170, 1
        %s420 = scalar_lea.sflag [#allocation4], %s419
        %s421 = sand.u32 %s170, 1
        %s422 = smul.addr %s421, 8
        %s423 = scalar_lea.vmem [#allocation10], %s422
        // Predicated region
        $region57: #{tpu_custom_call.1} parent=39 // pred_check
          %p424 = pneg %p180
        $region58: #{tpu_custom_call.1} parent=39 // pred_check_branch
          %426 = sbr.rel (%p424) target = $region60
        $region59: #{tpu_custom_call.1} parent=39 // pred_region
          %428 = vsyncadd %s420, 0
          %s429 = sadd.s32 %s31, %s30
          %s430 = smul.addr %s429, 8
          %s431 = scalar_lea.hbm %s5, %s430
          %s433 = sshll.u32 %s423, 4
          %s434 = int_to_ptr.vmem [resolvable:$true] %s433
          %s435 = sshll.u32 %s431, 4
          %s436 = int_to_ptr.hbm [resolvable:$true] %s435
          %438 = dma.vmem_to_hbm [thread:$0]  %s434, 128, %s436, %s420
        $region60: #{tpu_custom_call.1} parent=39 // pred_fallthru
          _
      $region40: #{tpu_custom_call.1} parent=5 // pred_fallthru
        _
      %p439 = scmp.le.s32.totalorder 2, %s21
      // Predicated region
      $region61: #{tpu_custom_call.1} parent=5 // pred_check
        %p440 = pneg %p439
      $region62: #{tpu_custom_call.1} parent=5 // pred_check_branch
        %442 = sbr.rel (%p440) target = $region64
      $region63: #{tpu_custom_call.1} parent=5 // pred_region
        %s443 = ssub.s32 %s21, 2
        // Predicated region
        $region65: #{tpu_custom_call.1} parent=63 // pred_check
          %p444 = pneg %p186
        $region66: #{tpu_custom_call.1} parent=63 // pred_check_branch
          %446 = sbr.rel (%p444) target = $region68
        $region67: #{tpu_custom_call.1} parent=63 // pred_region
          %s447 = sand.u32 %s171, 1
          %s448 = scalar_lea.sflag [#allocation4], %s447
          %s449 = sand.u32 %s171, 1
          %s450 = smul.addr %s449, 8
          %s451 = scalar_lea.vmem [#allocation10], %s450
          %453 = dma.done %s448, 128
        $region68: #{tpu_custom_call.1} parent=63 // pred_fallthru
          _
      $region64: #{tpu_custom_call.1} parent=5 // pred_fallthru
        _
    $region6: #{tpu_custom_call.1} parent=1 // loop_footer
      %s25 = sadd.s32 1, %s21
    $region7: #{tpu_custom_call.1} parent=1 // loop_footer_branch
      %20 = sbr.rel target = $region3
    $region8: #{tpu_custom_call.1} parent=1 // loop_exit
      _
    %454 = vsyncpa [#allocation3], 1
    %s455 = scalar_lea.sflag [#allocation3], 1
    %456 = vsyncpa %s455, 1
    %457 = vsyncpa [#allocation6], 1
    %s458 = scalar_lea.sflag [#allocation6], 1
    %459 = vsyncpa %s458, 1
    %460 = vsyncpa [#allocation9], 1
    %461 = vsyncpa [#allocation4], 1
    %s462 = scalar_lea.sflag [#allocation4], 1
    %463 = vsyncpa %s462, 1

</llo_original>
